<compile_context>
chip_gen: v5e
topology: v5e:2x2
jax: 0.10.0
libtpu: 0.0.40
codegen_flags: <defaults>
</compile_context>

<pallas_src>
import functools

import jax
import jax.numpy as jnp
from jax import lax
from jax.experimental import pallas as pl
from jax.experimental.pallas import tpu as pltpu


# dot_general dimension numbers for A @ B.T (contract both minor dims).
_TRANS_B_DIMS = (((1,), (1,)), ((), ()))


def critic_kernel(x_ref, w1_ref, b1_ref, w2_ref, b2_ref, w3_ref, b3_ref, v_ref):
    """One batch tile: two MXU matmuls + ReLU, then a lane-dense value row."""
    w_dtype = w1_ref.dtype

    x = x_ref[...]                                                   # (bm, S)
    h1 = jnp.dot(x, w1_ref[...], preferred_element_type=jnp.float32)
    h1 = jnp.maximum(h1 + b1_ref[...], 0.0)                          # (bm, H) f32

    h2 = jnp.dot(h1.astype(w_dtype), w2_ref[...],
                 preferred_element_type=jnp.float32)
    h2 = jnp.maximum(h2 + b2_ref[...], 0.0)                          # (bm, H) f32

    # Head: w3 rows (replicated across 8 sublanes) contracted against h2^T
    # -> (8, bm); all rows identical, keep row 0.  Result is lane-dense.
    v_full = lax.dot_general(w3_ref[...], h2.astype(w_dtype), _TRANS_B_DIMS,
                             preferred_element_type=jnp.float32)     # (8, bm)
    v_row = v_full[0:1, :] + b3_ref[0, 0]                            # (1, bm)
    v_ref[...] = jnp.reshape(v_row, v_ref.shape).astype(v_ref.dtype)


def _round_up(n, m):
    return ((n + m - 1) // m) * m


@functools.partial(jax.jit, static_argnames=("bm", "param_dtype"))
def critic_forward(x, params, *, bm=256, param_dtype=None):
    """x: [B, state_dim] -> v: [B, 1] float32 (matches the PyTorch Critic)."""
    w1, b1, w2, b2, w3, b3 = params
    B, state_dim = x.shape
    hidden_dim = w1.shape[1]

    cdtype = jnp.dtype(param_dtype) if param_dtype is not None else x.dtype

    # Matmul operands (optionally bf16); bias / accumulation math stays f32.
    xk = x.astype(cdtype)
    w1k = w1.astype(cdtype)
    w2k = w2.astype(cdtype)
    w3k = jnp.broadcast_to(w3.reshape(1, hidden_dim), (8, hidden_dim)).astype(cdtype)
    b1k = b1.reshape(1, hidden_dim).astype(jnp.float32)
    b2k = b2.reshape(1, hidden_dim).astype(jnp.float32)
    b3k = b3.reshape(1, 1).astype(jnp.float32)                       # SMEM scalar

    # Batch tile: big tiles amortise grid-step overhead and feed the MXU,
    # but don't pad a tiny batch all the way up to 256 rows.
    bm_eff = min(bm, _round_up(B, 8))
    Bp = _round_up(B, bm_eff)
    if Bp != B:
        xk = jnp.pad(xk, ((0, Bp - B), (0, 0)))
    nb = Bp // bm_eff

    out = pl.pallas_call(
        critic_kernel,
        out_shape=jax.ShapeDtypeStruct((nb, 1, bm_eff), jnp.float32),
        grid_spec=pltpu.PrefetchScalarGridSpec(
            num_scalar_prefetch=0,
            grid=(nb,),
            in_specs=[
                pl.BlockSpec((bm_eff, state_dim), lambda i: (i, 0)),       # x tile
                pl.BlockSpec((state_dim, hidden_dim), lambda i: (0, 0)),   # w1
                pl.BlockSpec((1, hidden_dim), lambda i: (0, 0)),           # b1
                pl.BlockSpec((hidden_dim, hidden_dim), lambda i: (0, 0)),  # w2
                pl.BlockSpec((1, hidden_dim), lambda i: (0, 0)),           # b2
                pl.BlockSpec((8, hidden_dim), lambda i: (0, 0)),           # w3 rows
                pl.BlockSpec(memory_space=pltpu.MemorySpace.SMEM),         # b3
            ],
            out_specs=pl.BlockSpec((1, 1, bm_eff), lambda i: (i, 0, 0)),
        ),
        compiler_params=pltpu.CompilerParams(
            dimension_semantics=("parallel",),
        ),
    )(xk, w1k, b1k, w2k, b2k, w3k, b3k)

    # Lane-dense (nb, 1, bm) slab -> (B, 1) value column (layout only).
    return out.reshape(Bp, 1)[:B]


def init_critic_params(key, state_dim, hidden_dim=64):
    """Deterministic synthetic init (PyTorch-ish uniform fan-in scaling).

    Weights stored as [in_features, out_features] (transpose of nn.Linear's
    weight) so the kernel computes y = x @ W + b directly.
    """
    ks = jax.random.split(key, 6)

    def lin(kw, kb, fan_in, fan_out):
        bound = 1.0 / jnp.sqrt(jnp.float32(fan_in))
        w = jax.random.uniform(kw, (fan_in, fan_out), jnp.float32, -bound, bound)
        b = jax.random.uniform(kb, (1, fan_out), jnp.float32, -bound, bound)
        return w, b

    w1, b1 = lin(ks[0], ks[1], state_dim, hidden_dim)
    w2, b2 = lin(ks[2], ks[3], hidden_dim, hidden_dim)
    w3, b3 = lin(ks[4], ks[5], hidden_dim, 1)
    return (w1, b1, w2, b2, w3, b3)


def critic_ref(x, params):
    w1, b1, w2, b2, w3, b3 = params
    h1 = jnp.maximum(x @ w1 + b1, 0.0)
    h2 = jnp.maximum(h1 @ w2 + b2, 0.0)
    return h2 @ w3 + b3


if __name__ == "__main__":
    key = jax.random.PRNGKey(0)
    k_x, k_p, k_x2 = jax.random.split(key, 3)

    state_dim, hidden_dim = 16, 64
    params = init_critic_params(k_p, state_dim, hidden_dim)

    # Small demo batch (single tile).
    x_small = jax.random.normal(k_x, (8, state_dim), jnp.float32)
    v_small = jax.block_until_ready(critic_forward(x_small, params))
    assert v_small.shape == (8, 1)
    assert jnp.allclose(v_small, critic_ref(x_small, params),
                        atol=1e-4, rtol=1e-4), "f32 small-batch mismatch"

    # Larger batch: exercises the 256-row tile, a 2-step parallel grid (both
    # v7x TensorCores), lane-dense output blocks and batch padding (500->512).
    x_big = jax.random.normal(k_x2, (500, state_dim), jnp.float32)
    v_big = jax.block_until_ready(critic_forward(x_big, params, bm=256))
    assert v_big.shape == (500, 1)
    v_big_ref = critic_ref(x_big, params)
    assert jnp.allclose(v_big, v_big_ref, atol=1e-4, rtol=1e-4), \
        "f32 large-batch mismatch"

    # bf16-storage path (f32 accumulation): ~halves x HBM traffic.
    v_bf16 = jax.block_until_ready(
        critic_forward(x_big, params, bm=256, param_dtype=jnp.bfloat16))
    assert v_bf16.shape == (500, 1)
    assert jnp.allclose(v_bf16, v_big_ref, atol=5e-2, rtol=5e-2), \
        "bf16 path mismatch vs f32 reference"

    print("KERNEL_OK")
</pallas_src>

<mosaic_0001>
module attributes {stable_mosaic.version = 11 : i64} {
  func.func @critic_kernel(%arg0: i32, %arg1: memref<8x16xf32, #tpu.memory_space<vmem>>, %arg2: memref<16x64xf32, #tpu.memory_space<vmem>>, %arg3: memref<1x64xf32, #tpu.memory_space<vmem>>, %arg4: memref<64x64xf32, #tpu.memory_space<vmem>>, %arg5: memref<1x64xf32, #tpu.memory_space<vmem>>, %arg6: memref<8x64xf32, #tpu.memory_space<vmem>>, %arg7: memref<1x1xf32, #tpu.memory_space<smem>>, %arg8: memref<1x1x8xf32, #tpu.memory_space<vmem>>) attributes {dimension_semantics = [#tpu.dimension_semantics<parallel>], iteration_bounds = array<i64: 1>, scalar_prefetch = 0 : i64, scratch_operands = 0 : i64, tpu.core_type = #tpu.core_type<tc>, window_params = [{transform_indices = @transform_0, window_bounds = array<i64: 8, 16>}, {pipeline_mode = #tpu.pipeline_mode<synchronous>, transform_indices = @transform_1, window_bounds = array<i64: 16, 64>}, {pipeline_mode = #tpu.pipeline_mode<synchronous>, transform_indices = @transform_2, window_bounds = array<i64: 1, 64>}, {pipeline_mode = #tpu.pipeline_mode<synchronous>, transform_indices = @transform_3, window_bounds = array<i64: 64, 64>}, {pipeline_mode = #tpu.pipeline_mode<synchronous>, transform_indices = @transform_4, window_bounds = array<i64: 1, 64>}, {pipeline_mode = #tpu.pipeline_mode<synchronous>, transform_indices = @transform_5, window_bounds = array<i64: 8, 64>}, {transform_indices = @transform_6, window_bounds = array<i64: 1, 1>}, {transform_indices = @transform_7, window_bounds = array<i64: 1, 1, 8>}]} {
    %c0 = arith.constant 0 : index
    %c0_0 = arith.constant 0 : index
    %0 = vector.load %arg1[%c0, %c0_0] : memref<8x16xf32, #tpu.memory_space<vmem>>, vector<8x16xf32>
    %c0_1 = arith.constant 0 : index
    %c0_2 = arith.constant 0 : index
    %1 = vector.load %arg2[%c0_1, %c0_2] : memref<16x64xf32, #tpu.memory_space<vmem>>, vector<16x64xf32>
    %cst = arith.constant dense<0.000000e+00> : vector<8x64xf32>
    %2 = tpu.matmul %0, %1, %cst {dimension_numbers = #tpu.dot_dimension_numbers<[1], [0], [0], [1], [0, 0, 1, 1], [], []>} : vector<8x16xf32>, vector<16x64xf32>, vector<8x64xf32> -> vector<8x64xf32>
    %c0_3 = arith.constant 0 : index
    %c0_4 = arith.constant 0 : index
    %3 = vector.load %arg3[%c0_3, %c0_4] : memref<1x64xf32, #tpu.memory_space<vmem>>, vector<1x64xf32>
    %4 = vector.broadcast %3 : vector<1x64xf32> to vector<8x64xf32>
    %5 = arith.addf %2, %4 : vector<8x64xf32>
    %cst_5 = arith.constant 0.000000e+00 : f32
    %6 = vector.broadcast %cst_5 : f32 to vector<8x64xf32>
    %7 = arith.maximumf %5, %6 : vector<8x64xf32>
    %c0_6 = arith.constant 0 : index
    %c0_7 = arith.constant 0 : index
    %8 = vector.load %arg4[%c0_6, %c0_7] : memref<64x64xf32, #tpu.memory_space<vmem>>, vector<64x64xf32>
    %cst_8 = arith.constant dense<0.000000e+00> : vector<8x64xf32>
    %9 = tpu.matmul %7, %8, %cst_8 {dimension_numbers = #tpu.dot_dimension_numbers<[1], [0], [0], [1], [0, 0, 1, 1], [], []>} : vector<8x64xf32>, vector<64x64xf32>, vector<8x64xf32> -> vector<8x64xf32>
    %c0_9 = arith.constant 0 : index
    %c0_10 = arith.constant 0 : index
    %10 = vector.load %arg5[%c0_9, %c0_10] : memref<1x64xf32, #tpu.memory_space<vmem>>, vector<1x64xf32>
    %11 = vector.broadcast %10 : vector<1x64xf32> to vector<8x64xf32>
    %12 = arith.addf %9, %11 : vector<8x64xf32>
    %cst_11 = arith.constant 0.000000e+00 : f32
    %13 = vector.broadcast %cst_11 : f32 to vector<8x64xf32>
    %14 = arith.maximumf %12, %13 : vector<8x64xf32>
    %c0_12 = arith.constant 0 : index
    %c0_13 = arith.constant 0 : index
    %15 = vector.load %arg6[%c0_12, %c0_13] : memref<8x64xf32, #tpu.memory_space<vmem>>, vector<8x64xf32>
    %cst_14 = arith.constant dense<0.000000e+00> : vector<8x8xf32>
    %16 = tpu.matmul %15, %14, %cst_14 {dimension_numbers = #tpu.dot_dimension_numbers<[1], [1], [0], [0], [0, 0, 1, 0], [], []>} : vector<8x64xf32>, vector<8x64xf32>, vector<8x8xf32> -> vector<8x8xf32>
    %17 = vector.extract_strided_slice %16 {offsets = [0, 0], sizes = [1, 8], strides = [1, 1]} : vector<8x8xf32> to vector<1x8xf32>
    %c0_15 = arith.constant 0 : index
    %c0_16 = arith.constant 0 : index
    %18 = memref.load %arg7[%c0_15, %c0_16] : memref<1x1xf32, #tpu.memory_space<smem>>
    %19 = vector.broadcast %18 : f32 to vector<1x8xf32>
    %20 = arith.addf %17, %19 : vector<1x8xf32>
    %21 = vector.shape_cast %20 : vector<1x8xf32> to vector<1x1x8xf32>
    %c0_17 = arith.constant 0 : index
    %c0_18 = arith.constant 0 : index
    %c0_19 = arith.constant 0 : index
    %22 = vector.load %arg8[%c0_17, %c0_18, %c0_19] : memref<1x1x8xf32, #tpu.memory_space<vmem>>, vector<1x1x8xf32>
    tpu.vector_store %arg8[%c0_17, %c0_18, %c0_19], %21 {strides = array<i32>} : memref<1x1x8xf32, #tpu.memory_space<vmem>>, vector<1x1x8xf32>,
    return
  }
  func.func @transform_0(%arg0: i32) -> (i32, i32) {
    %c0_i32 = arith.constant 0 : i32
    %c0_i32_0 = arith.constant 0 : i32
    return %arg0, %c0_i32 : i32, i32
  }
  func.func @transform_1(%arg0: i32) -> (i32, i32) {
    %c0_i32 = arith.constant 0 : i32
    %c0_i32_0 = arith.constant 0 : i32
    %c0_i32_1 = arith.constant 0 : i32
    return %c0_i32, %c0_i32_0 : i32, i32
  }
  func.func @transform_2(%arg0: i32) -> (i32, i32) {
    %c0_i32 = arith.constant 0 : i32
    %c0_i32_0 = arith.constant 0 : i32
    %c0_i32_1 = arith.constant 0 : i32
    return %c0_i32, %c0_i32_0 : i32, i32
  }
  func.func @transform_3(%arg0: i32) -> (i32, i32) {
    %c0_i32 = arith.constant 0 : i32
    %c0_i32_0 = arith.constant 0 : i32
    %c0_i32_1 = arith.constant 0 : i32
    return %c0_i32, %c0_i32_0 : i32, i32
  }
  func.func @transform_4(%arg0: i32) -> (i32, i32) {
    %c0_i32 = arith.constant 0 : i32
    %c0_i32_0 = arith.constant 0 : i32
    %c0_i32_1 = arith.constant 0 : i32
    return %c0_i32, %c0_i32_0 : i32, i32
  }
  func.func @transform_5(%arg0: i32) -> (i32, i32) {
    %c0_i32 = arith.constant 0 : i32
    %c0_i32_0 = arith.constant 0 : i32
    %c0_i32_1 = arith.constant 0 : i32
    return %c0_i32, %c0_i32_0 : i32, i32
  }
  func.func @transform_6(%arg0: i32) -> (i32, i32) {
    %c0_i32 = arith.constant 0 : i32
    %c0_i32_0 = arith.constant 0 : i32
    %c0_i32_1 = arith.constant 0 : i32
    return %c0_i32, %c0_i32_0 : i32, i32
  }
  func.func @transform_7(%arg0: i32) -> (i32, i32, i32) {
    %c0_i32 = arith.constant 0 : i32
    %c0_i32_0 = arith.constant 0 : i32
    %c0_i32_1 = arith.constant 0 : i32
    return %arg0, %c0_i32, %c0_i32_0 : i32, i32, i32
  }
}

</mosaic_0001>

<llo_original>
// kernel: critic_forward.1
$region0: #{critic_forward.1}
  #allocation0 [shape = 'u32[]', space=smem, size = 0x4, offset = 0x4, fixed_abs, tag = 'smem constant byte address 0x4 - core index']
  #allocation1 [shape = 'u32[72,128]{1,0:T(1,128)}', space=vmem, size = 0x9000, scoped, tag = 'internal scratch']
  #allocation2 [shape = 'f32[1,1]{1,0:T(1,128)S(6)}', space=smem, size = 0x200, scoped, tag = 'scoped memory for critic_forward.1']
  %s0 = inlined_call_operand.vmem [shape: f32[8,16], index: 0, kind: input, shape index: {}]
  %s1 = inlined_call_operand.hbm [shape: f32[16,64], index: 1, kind: input, shape index: {}]
  %s2 = inlined_call_operand.vmem [shape: f32[1,64], index: 2, kind: input, shape index: {}]
  %s3 = inlined_call_operand.hbm [shape: f32[64,64], index: 3, kind: input, shape index: {}]
  %s4 = inlined_call_operand.vmem [shape: f32[1,64], index: 4, kind: input, shape index: {}]
  %s5 = inlined_call_operand.vmem [shape: f32[8,64], index: 5, kind: input, shape index: {}]
  %s6 = inlined_call_operand.<no memory space> [shape: f32[1,1], index: 6, kind: input, shape index: {}]
  %s7 = inlined_call_operand.hbm [shape: f32[1,1,8], index: 7, kind: output, shape index: {}]
  %s8 = sld [smem:[#allocation0]]
  $region46: #{critic_forward.1} parent=0
    _
  %s10 = ssub.s32 1, %s8
  %s11 = scalar_select 0, %s10, %s8
  %12 = sst [smem:[#allocation2]] %s6
  $region1: #{critic_forward.1} parent=0
    #allocation3 [shape = 'u8[8192]{0}', space=vmem, size = 0x2000, scoped, tag = 'input window, operand 1, single buffered']
    #allocation4 [shape = 's32[1]{0}', space=sflag, size = 0x4, scoped, tag = 'scoped memory for critic_forward.1']
    #allocation5 [shape = 's32[1]{0}', space=sflag, size = 0x4, scoped, tag = 'scoped memory for critic_forward.1']
    #allocation6 [shape = 'u8[32768]{0}', space=vmem, size = 0x8000, scoped, tag = 'input window, operand 3, single buffered']
    #allocation7 [shape = 's32[1]{0}', space=sflag, size = 0x4, scoped, tag = 'scoped memory for critic_forward.1']
    #allocation8 [shape = 'u8[512]{0}', space=vmem, size = 0x400, scoped, tag = 'output window, operand 0, single buffered']
    %13 = vsyncpa [#allocation4], 0
    %14 = vsyncpa [#allocation7], 0
    %15 = vsyncpa [#allocation5], 0
    // Predicated region
    $region2: #{critic_forward.1} parent=1 // pred_check
      _
    $region3: #{critic_forward.1} parent=1 // pred_check_branch
      %17 = sbr.rel (0) target = $region5
    $region4: #{critic_forward.1} parent=1 // pred_region
      _
    $region5: #{critic_forward.1} parent=1 // pred_fallthru
      _
    // Predicated region
    $region6: #{critic_forward.1} parent=1 // pred_check
      _
    $region7: #{critic_forward.1} parent=1 // pred_check_branch
      %19 = sbr.rel (0) target = $region9
    $region8: #{critic_forward.1} parent=1 // pred_region
      %21 = vsyncadd [#allocation4], 0
      %s22 = sshll.u32 %s1, 4
      %s23 = int_to_ptr.hbm [resolvable:$true] %s22
      %s24 = sshll.u32 [#allocation3], 4
      %s25 = int_to_ptr.vmem [resolvable:$true] %s24
      %30 = dma.hbm_to_vmem [thread:$0]  %s23, 256, %s25, [#allocation4], 128, 128, 8
    $region9: #{critic_forward.1} parent=1 // pred_fallthru
      _
    // Predicated region
    $region10: #{critic_forward.1} parent=1 // pred_check
      _
    $region11: #{critic_forward.1} parent=1 // pred_check_branch
      %32 = sbr.rel (0) target = $region13
    $region12: #{critic_forward.1} parent=1 // pred_region
      _
    $region13: #{critic_forward.1} parent=1 // pred_fallthru
      _
    // Predicated region
    $region14: #{critic_forward.1} parent=1 // pred_check
      _
    $region15: #{critic_forward.1} parent=1 // pred_check_branch
      %34 = sbr.rel (0) target = $region17
    $region16: #{critic_forward.1} parent=1 // pred_region
      %36 = vsyncadd [#allocation7], 0
      %s37 = sshll.u32 %s3, 4
      %s38 = int_to_ptr.hbm [resolvable:$true] %s37
      %s39 = sshll.u32 [#allocation6], 4
      %s40 = int_to_ptr.vmem [resolvable:$true] %s39
      %45 = dma.hbm_to_vmem [thread:$0]  %s38, 1024, %s40, [#allocation7], 128, 128, 8
    $region17: #{critic_forward.1} parent=1 // pred_fallthru
      _
    // Predicated region
    $region18: #{critic_forward.1} parent=1 // pred_check
      _
    $region19: #{critic_forward.1} parent=1 // pred_check_branch
      %47 = sbr.rel (0) target = $region21
    $region20: #{critic_forward.1} parent=1 // pred_region
      _
    $region21: #{critic_forward.1} parent=1 // pred_fallthru
      _
    // Predicated region
    $region22: #{critic_forward.1} parent=1 // pred_check
      _
    $region23: #{critic_forward.1} parent=1 // pred_check_branch
      %49 = sbr.rel (0) target = $region25
    $region24: #{critic_forward.1} parent=1 // pred_region
      _
    $region25: #{critic_forward.1} parent=1 // pred_fallthru
      _
    // Predicated region
    $region26: #{critic_forward.1} parent=1 // pred_check
      _
    $region27: #{critic_forward.1} parent=1 // pred_check_branch
      %51 = sbr.rel (0) target = $region29
    $region28: #{critic_forward.1} parent=1 // pred_region
      _
    $region29: #{critic_forward.1} parent=1 // pred_fallthru
      _
    // Predicated region
    $region30: #{critic_forward.1} parent=1 // pred_check
      _
    $region31: #{critic_forward.1} parent=1 // pred_check_branch
      %53 = sbr.rel (0) target = $region33
    $region32: #{critic_forward.1} parent=1 // pred_region
      %55 = dma.done [#allocation4], 256
    $region33: #{critic_forward.1} parent=1 // pred_fallthru
      _
    // Predicated region
    $region34: #{critic_forward.1} parent=1 // pred_check
      _
    $region35: #{critic_forward.1} parent=1 // pred_check_branch
      %57 = sbr.rel (0) target = $region37
    $region36: #{critic_forward.1} parent=1 // pred_region
      %59 = dma.done [#allocation7], 1024
    $region37: #{critic_forward.1} parent=1 // pred_fallthru
      _
    %v60 = vld [vmem:[%s0] sm:$0xff]
    %v61 = vld [vmem:[#allocation3] sm:$0xff]
    %v62 = vld [vmem:[#allocation3 + $0x8] sm:$0xff]
    %v63 = vld [vmem:[%s2] sm:$0x1]
    %v65 = vperm.slane %v63, 0
    %vm67 = vcmask 130048
    %v69 = vsel %vm67, %v60, 0
    %71 = vmatpush.msra.mxu0 0.0
    %72 = vmatpush.msra.mxu0 0.0
    %73 = vmatpush.msra.mxu0 0.0
    %74 = vmatpush.msra.mxu0 0.0
    %75 = vmatpush.msra.mxu0 0.0
    %76 = vmatpush.msra.mxu0 0.0
    %77 = vmatpush.msra.mxu0 0.0
    %78 = vmatpush.msra.mxu0 0.0
    %79 = vmatpush.msra.mxu0 0.0
    %80 = vmatpush.msra.mxu0 0.0
    %81 = vmatpush.msra.mxu0 0.0
    %82 = vmatpush.msra.mxu0 0.0
    %83 = vmatpush.msra.mxu0 0.0
    %84 = vmatpush.msra.mxu0 0.0
    %85 = vmatpush.msra.mxu0 %v62
    %86 = vmatpush.msra.mxu0 %v61
    %87 = vmatmul.f32.gmra.mxu0 %v69
    %v88 = vpop.f32.mrf.mxu0
    %v89 = vadd.f32 %v65, %v88
    %90 = vdwg.mxu0
    %v91 = vmax.f32 %v89, 0.0
    %v92 = vld [vmem:[#allocation6] sm:$0xff]
    %v93 = vld [vmem:[#allocation6 + $0x8] sm:$0xff]
    %v94 = vld [vmem:[#allocation6 + $0x10] sm:$0xff]
    %v95 = vld [vmem:[#allocation6 + $0x18] sm:$0xff]
    %v96 = vld [vmem:[#allocation6 + $0x20] sm:$0xff]
    %v97 = vld [vmem:[#allocation6 + $0x28] sm:$0xff]
    %v98 = vld [vmem:[#allocation6 + $0x30] sm:$0xff]
    %v99 = vld [vmem:[#allocation6 + $0x38] sm:$0xff]
    %v100 = vld [vmem:[%s4] sm:$0x1]
    %v102 = vperm.slane %v100, 0
    %vm104 = vcmask 523264
    %v106 = vsel %vm104, %v91, 0
    %108 = vmatpush.msra.mxu0 0.0
    %109 = vmatpush.msra.mxu0 0.0
    %110 = vmatpush.msra.mxu0 0.0
    %111 = vmatpush.msra.mxu0 0.0
    %112 = vmatpush.msra.mxu0 0.0
    %113 = vmatpush.msra.mxu0 0.0
    %114 = vmatpush.msra.mxu0 0.0
    %115 = vmatpush.msra.mxu0 0.0
    %116 = vmatpush.msra.mxu0 %v99
    %117 = vmatpush.msra.mxu0 %v98
    %118 = vmatpush.msra.mxu0 %v97
    %119 = vmatpush.msra.mxu0 %v96
    %120 = vmatpush.msra.mxu0 %v95
    %121 = vmatpush.msra.mxu0 %v94
    %122 = vmatpush.msra.mxu0 %v93
    %123 = vmatpush.msra.mxu0 %v92
    %124 = vmatmul.f32.gmra.mxu0 %v106
    %v125 = vpop.f32.mrf.mxu0
    %v126 = vadd.f32 %v102, %v125
    %127 = vdwg.mxu0
    %v128 = vmax.f32 %v126, 0.0
    %v129 = vld [vmem:[%s5] sm:$0xff]
    %v131 = vsel %vm104, %v129, 0
    %v134 = vsel %vm104, %v128, 0
    %136 = vmatpush.xpose.msra.mxu0 0.0
    %137 = vmatpush.xpose.msra.mxu0 0.0
    %138 = vmatpush.xpose.msra.mxu0 0.0
    %139 = vmatpush.xpose.msra.mxu0 0.0
    %140 = vmatpush.xpose.msra.mxu0 0.0
    %141 = vmatpush.xpose.msra.mxu0 0.0
    %142 = vmatpush.xpose.msra.mxu0 0.0
    %143 = vmatpush.xpose.msra.mxu0 0.0
    %144 = vmatpush.xpose.msra.mxu0 0.0
    %145 = vmatpush.xpose.msra.mxu0 0.0
    %146 = vmatpush.xpose.msra.mxu0 0.0
    %147 = vmatpush.xpose.msra.mxu0 0.0
    %148 = vmatpush.xpose.msra.mxu0 0.0
    %149 = vmatpush.xpose.msra.mxu0 0.0
    %150 = vmatpush.xpose.msra.mxu0 0.0
    %151 = vmatpush.xpose.msra.mxu0 %v134
    %152 = vmatmul.f32.gmra.mxu0 %v131
    %v153 = vpop.f32.mrf.mxu0
    %v154 = vadd.f32 0.0, %v153
    %155 = vdwg.mxu0
    %s156 = sld [smem:[#allocation2]]
    %v157 = vstv %s156
    %v158 = vadd.f32 %v154, %v157
    %vm159 = vcmask 57344
    %160 = vst.msk [vmem:[#allocation8] sm:$0x1] %vm159, %v158
    // Predicated region
    $region38: #{critic_forward.1} parent=1 // pred_check
      _
    $region39: #{critic_forward.1} parent=1 // pred_check_branch
      %162 = sbr.rel (0) target = $region41
    $region40: #{critic_forward.1} parent=1 // pred_region
      %164 = vsyncadd [#allocation5], 0
      %s166 = sshll.u32 [#allocation8], 4
      %s167 = int_to_ptr.vmem [resolvable:$true] %s166
      %s168 = sshll.u32 %s7, 4
      %s169 = int_to_ptr.hbm [resolvable:$true] %s168
      %171 = dma.vmem_to_hbm [thread:$0]  %s167, 16, %s169, [#allocation5]
    $region41: #{critic_forward.1} parent=1 // pred_fallthru
      _
    // Predicated region
    $region42: #{critic_forward.1} parent=1 // pred_check
      _
    $region43: #{critic_forward.1} parent=1 // pred_check_branch
      %173 = sbr.rel (0) target = $region45
    $region44: #{critic_forward.1} parent=1 // pred_region
      %175 = dma.done [#allocation5], 16
    $region45: #{critic_forward.1} parent=1 // pred_fallthru
      _
    %176 = vsyncpa [#allocation4], 1
    %177 = vsyncpa [#allocation7], 1
    %178 = vsyncpa [#allocation5], 1

</llo_original>
